<compile_context>
chip_gen: v7x
topology: tpu7x:2x2x1
jax: 0.10.0
libtpu: 0.0.40
codegen_flags: <defaults>
</compile_context>

<pallas_src>
import math

import jax
import jax.numpy as jnp
from jax.experimental import pallas as pl
from jax.experimental.pallas import tpu as pltpu

_LANES = 128
_SUBLANES = 8
_TARGET_BLOCK_BYTES = 4 * 1024 * 1024   # ~4 MiB blocks; 2x in + 2x out <= 16 MiB VMEM
_VMEM_LIMIT_BYTES = 32 * 1024 * 1024    # > v5e 16 MiB scoped default, < v7x 64 MiB physical


def _round_up(x, m):
    return ((x + m - 1) // m) * m


def _copy_kernel(x_ref, o_ref):
    # Identity copy of one block (lane-dense vst when the block is full-D / x128).
    o_ref[...] = x_ref[...]


def _pallas_copy_2d(x2d, target_block_bytes):
    """Materialized identity copy of a 2-D array via a Pallas kernel."""
    N, D = x2d.shape
    itemsize = jnp.dtype(x2d.dtype).itemsize
    total_bytes = N * D * itemsize
    row_bytes = D * itemsize
    out_shape = jax.ShapeDtypeStruct((N, D), x2d.dtype)

    if total_bytes <= target_block_bytes:
        # Single full-extent block: exempt from (8,128) divisibility, no padding,
        # one grid step (best for tiny inputs on every generation).
        return pl.pallas_call(
            _copy_kernel,
            out_shape=out_shape,
            grid=(1,),
            in_specs=[pl.BlockSpec((N, D), lambda i: (0, 0))],
            out_specs=pl.BlockSpec((N, D), lambda i: (0, 0)),
            compiler_params=pltpu.CompilerParams(
                dimension_semantics=("arbitrary",),
                vmem_limit_bytes=_VMEM_LIMIT_BYTES,
            ),
        )(x2d)

    if _SUBLANES * row_bytes > target_block_bytes and D > _LANES:
        # Rows too wide for row-only tiling: tile both dims (lane blocks x128).
        bn = _SUBLANES
        dk = max(_LANES,
                 (target_block_bytes // (bn * itemsize)) // _LANES * _LANES)
        grid = (pl.cdiv(N, bn), pl.cdiv(D, dk))
        return pl.pallas_call(
            _copy_kernel,
            out_shape=out_shape,
            grid=grid,
            in_specs=[pl.BlockSpec((bn, dk), lambda i, j: (i, j))],
            out_specs=pl.BlockSpec((bn, dk), lambda i, j: (i, j)),
            compiler_params=pltpu.CompilerParams(
                dimension_semantics=("parallel", "parallel"),
                vmem_limit_bytes=_VMEM_LIMIT_BYTES,
            ),
        )(x2d)

    # Row tiling with the full feature dim on the lane axis (lane-dense stores;
    # ragged D handled by the full-extent exemption -- no pad/slice passes).
    bn = max(_SUBLANES, (target_block_bytes // row_bytes) // _SUBLANES * _SUBLANES)
    bn = min(bn, _round_up(N, _SUBLANES))
    grid_n = pl.cdiv(N, bn)
    if grid_n > 1 and grid_n % 2 == 1:
        # v7x shards "parallel" grid axes across 2 TensorCores: prefer an even
        # block count so neither core idles on a tail step (harmless on
        # single-core v5e/v6e; partial last blocks are clipped by Pallas).
        bn_even = _round_up(pl.cdiv(N, grid_n + 1), _SUBLANES)
        if bn_even >= _SUBLANES:
            bn = bn_even
            grid_n = pl.cdiv(N, bn)
    return pl.pallas_call(
        _copy_kernel,
        out_shape=out_shape,
        grid=(grid_n,),
        in_specs=[pl.BlockSpec((bn, D), lambda i: (i, 0))],
        out_specs=pl.BlockSpec((bn, D), lambda i: (i, 0)),
        compiler_params=pltpu.CompilerParams(
            dimension_semantics=("parallel",),
            vmem_limit_bytes=_VMEM_LIMIT_BYTES,
        ),
    )(x2d)


def pallas_flatten(x, materialize=False, target_block_bytes=_TARGET_BLOCK_BYTES):
    """Flatten (N, ...) -> (N, prod(rest)), matching torch `x.view(x.size(0), -1)`.

    Default: metadata-only reshape -- no kernel, no HBM traffic (recommended).
    materialize=True: run the Pallas identity-copy kernel to produce a freshly
    materialized output buffer.
    """
    N = x.shape[0]
    D = math.prod(x.shape[1:]) if x.ndim > 1 else 1
    flat = x.reshape(N, D)
    if not materialize:
        return flat
    return _pallas_copy_2d(flat, target_block_bytes)


class Lambda:
    """JAX equivalent of the PyTorch Lambda module: forward(*input) = fn(*input)."""

    def __init__(self, fn):
        self.fn = fn

    def __call__(self, *inputs):
        return self.fn(*inputs)


if __name__ == "__main__":
    key = jax.random.PRNGKey(0)
    k0, k1, k2 = jax.random.split(key, 3)

    # Recommended fast path: flatten is metadata-only, no kernel launched.
    flatten = Lambda(pallas_flatten)
    # Materialized path: runs the Pallas identity-copy kernel.
    flatten_copy = Lambda(lambda x: pallas_flatten(x, materialize=True))

    # Aligned NCHW input (D = 1024).
    x = jax.random.normal(k0, (2, 4, 16, 16), dtype=jnp.float32)
    ref = x.reshape(x.shape[0], -1)
    y_fast = flatten(x)
    y_copy = flatten_copy(x)
    jax.block_until_ready((y_fast, y_copy))
    assert y_fast.shape == (2, 1024) and y_copy.shape == (2, 1024)
    assert jnp.array_equal(y_fast, ref), "reshape path mismatch"
    assert jnp.array_equal(y_copy, ref), "Pallas copy mismatch (aligned case)"

    # MNIST-shaped input: D = 784 is NOT a multiple of 128 -> full-extent block,
    # no pad / slice passes.
    xm = jax.random.normal(k1, (2, 1, 28, 28), dtype=jnp.float32)
    refm = xm.reshape(2, -1)
    ym = flatten_copy(xm)
    jax.block_until_ready(ym)
    assert ym.shape == (2, 784)
    assert jnp.array_equal(ym, refm), "Pallas copy mismatch (ragged case)"

    # Exercise the multi-block paths at small shapes by forcing a tiny block target.
    xb = jax.random.normal(k2, (64, 4, 16, 16), dtype=jnp.float32)
    refb = xb.reshape(64, -1)
    yb_rows = pallas_flatten(xb, materialize=True, target_block_bytes=64 * 1024)  # row-tiled grid
    yb_2d = pallas_flatten(xb, materialize=True, target_block_bytes=8 * 1024)     # 2-D tiled grid
    jax.block_until_ready((yb_rows, yb_2d))
    assert jnp.array_equal(yb_rows, refb), "Pallas copy mismatch (row-tiled case)"
    assert jnp.array_equal(yb_2d, refb), "Pallas copy mismatch (2-D tiled case)"

    # TODO(synk): Lambda can wrap arbitrary fns; only the flatten instantiation
    # used in pwl_mnist is realized here with a Pallas kernel.
    print("KERNEL_OK")
</pallas_src>

<mosaic_0001>
module attributes {stable_mosaic.version = 11 : i64} {
  func.func @_copy_kernel(%arg0: i32, %arg1: memref<2x1024xf32, #tpu.memory_space<vmem>>, %arg2: memref<2x1024xf32, #tpu.memory_space<vmem>>) attributes {dimension_semantics = [#tpu.dimension_semantics<arbitrary>], iteration_bounds = array<i64: 1>, scalar_prefetch = 0 : i64, scratch_operands = 0 : i64, tpu.core_type = #tpu.core_type<tc>, window_params = [{pipeline_mode = #tpu.pipeline_mode<synchronous>, transform_indices = @transform_0, window_bounds = array<i64: 2, 1024>}, {pipeline_mode = #tpu.pipeline_mode<synchronous>, transform_indices = @transform_1, window_bounds = array<i64: 2, 1024>}]} {
    %c0 = arith.constant 0 : index
    %c0_0 = arith.constant 0 : index
    %0 = vector.load %arg1[%c0, %c0_0] : memref<2x1024xf32, #tpu.memory_space<vmem>>, vector<2x1024xf32>
    %c0_1 = arith.constant 0 : index
    %c0_2 = arith.constant 0 : index
    %1 = vector.load %arg2[%c0_1, %c0_2] : memref<2x1024xf32, #tpu.memory_space<vmem>>, vector<2x1024xf32>
    tpu.vector_store %arg2[%c0_1, %c0_2], %0 {strides = array<i32>} : memref<2x1024xf32, #tpu.memory_space<vmem>>, vector<2x1024xf32>,
    return
  }
  func.func @transform_0(%arg0: i32) -> (i32, i32) {
    %c0_i32 = arith.constant 0 : i32
    %c0_i32_0 = arith.constant 0 : i32
    %c0_i32_1 = arith.constant 0 : i32
    return %c0_i32, %c0_i32_0 : i32, i32
  }
  func.func @transform_1(%arg0: i32) -> (i32, i32) {
    %c0_i32 = arith.constant 0 : i32
    %c0_i32_0 = arith.constant 0 : i32
    %c0_i32_1 = arith.constant 0 : i32
    return %c0_i32, %c0_i32_0 : i32, i32
  }
}

</mosaic_0001>

<llo_original>
// kernel: tpu_custom_call.1
$region0: #{tpu_custom_call.1}
  #allocation0 [shape = 'u32[]', space=smem, size = 0x4, offset = 0x4, fixed_abs, tag = 'smem constant byte address 0x4 - core index']
  #allocation1 [shape = 'u32[144,128]{1,0:T(1,128)}', space=vmem, size = 0x12000, scoped, tag = 'internal scratch']
  %s0 = inlined_call_operand.hbm [shape: f32[2,1024], index: 0, kind: input, shape index: {}]
  %s1 = inlined_call_operand.hbm [shape: f32[2,1024], index: 1, kind: output, shape index: {}]
  %s2 = sld [smem:[#allocation0]]
  $region18: #{tpu_custom_call.1} parent=0
    _
  %s4 = ssub.s32 1, %s2
  %s5 = scalar_select 0, %s4, %s2
  $region1: #{tpu_custom_call.1} parent=0
    #allocation2 [shape = 'u8[8192]{0}', space=vmem, size = 0x2000, scoped, tag = 'input window, operand 0, single buffered']
    #allocation3 [shape = 's32[1]{0}', space=sflag, size = 0x4, scoped, tag = 'scoped memory for tpu_custom_call.1']
    #allocation4 [shape = 's32[1]{0}', space=sflag, size = 0x4, scoped, tag = 'scoped memory for tpu_custom_call.1']
    #allocation5 [shape = 'u8[8192]{0}', space=vmem, size = 0x2000, scoped, tag = 'output window, operand 0, single buffered']
    %6 = vsyncpa [#allocation3], 0
    %7 = vsyncpa [#allocation4], 0
    // Predicated region
    $region2: #{tpu_custom_call.1} parent=1 // pred_check
      _
    $region3: #{tpu_custom_call.1} parent=1 // pred_check_branch
      %9 = sbr.rel (0) target = $region5
    $region4: #{tpu_custom_call.1} parent=1 // pred_region
      %s11 = ssub.s32 256, 256
      %12 = vsyncadd [#allocation3], %s11
      %s14 = sshll.u32 [#allocation2], 4
      %s15 = int_to_ptr.vmem [resolvable:$true] %s14
      %17 = dma.hbm_to_vmem [thread:$0]  %s0, 256, %s15, [#allocation3]
    $region5: #{tpu_custom_call.1} parent=1 // pred_fallthru
      _
    // Predicated region
    $region6: #{tpu_custom_call.1} parent=1 // pred_check
      _
    $region7: #{tpu_custom_call.1} parent=1 // pred_check_branch
      %19 = sbr.rel (0) target = $region9
    $region8: #{tpu_custom_call.1} parent=1 // pred_region
      %20 = dma.done [#allocation3], 256
    $region9: #{tpu_custom_call.1} parent=1 // pred_fallthru
      _
    %v21 = vld [vmem:[#allocation2] sm:$0xff]
    %v22 = vld [vmem:[#allocation2 + $0x8] sm:$0xff]
    %23 = vst [vmem:[#allocation5] sm:$0xff] %v21
    %24 = vst [vmem:[#allocation5 + $0x8] sm:$0xff] %v22
    // Predicated region
    $region10: #{tpu_custom_call.1} parent=1 // pred_check
      _
    $region11: #{tpu_custom_call.1} parent=1 // pred_check_branch
      %26 = sbr.rel (0) target = $region13
    $region12: #{tpu_custom_call.1} parent=1 // pred_region
      %s28 = ssub.s32 256, 256
      %29 = vsyncadd [#allocation4], %s28
      %s31 = sshll.u32 [#allocation5], 4
      %s32 = int_to_ptr.vmem [resolvable:$true] %s31
      %34 = dma.vmem_to_hbm [thread:$0]  %s32, 256, %s1, [#allocation4]
    $region13: #{tpu_custom_call.1} parent=1 // pred_fallthru
      _
    // Predicated region
    $region14: #{tpu_custom_call.1} parent=1 // pred_check
      _
    $region15: #{tpu_custom_call.1} parent=1 // pred_check_branch
      %36 = sbr.rel (0) target = $region17
    $region16: #{tpu_custom_call.1} parent=1 // pred_region
      %37 = dma.done [#allocation4], 256
    $region17: #{tpu_custom_call.1} parent=1 // pred_fallthru
      _
    %38 = vsyncpa [#allocation3], 1
    %39 = vsyncpa [#allocation4], 1

</llo_original>
